<compile_context>
chip_gen: v7x
topology: tpu7x:2x2x1
jax: 0.10.0
libtpu: 0.0.40
codegen_flags: <defaults>
</compile_context>

<pallas_src>
import functools

import jax
import jax.numpy as jnp
from jax.experimental import pallas as pl
from jax.experimental.pallas import tpu as pltpu

FEATURE_DIM = 256
LAYER_DIM = 128
NUM_CLASS = 8     # module default is 0 (degenerate); pick a small nonzero class count
LANE = 128


def mlp_metric_kernel(f1_ref, f2_ref,
                      w1_ref, b1_ref,
                      w2_ref, b2_ref,
                      w3_ref, b3_ref,
                      wc_ref,
                      o_ref):
    # |feat2 - feat1| on the VPU in f32 (v5e has no bf16 VALU path).
    x = jnp.abs(f2_ref[...] - f1_ref[...])

    # fc1: Linear(feature_dim, 128) + ReLU.  bf16 MXU inputs, f32 accumulate,
    # bias + ReLU in f32.
    h = jnp.dot(x.astype(jnp.bfloat16), w1_ref[...],
                preferred_element_type=jnp.float32)
    h = jnp.maximum(h + b1_ref[...], 0.0)

    # fc2: Linear(128, 128) + ReLU
    h = jnp.dot(h.astype(jnp.bfloat16), w2_ref[...],
                preferred_element_type=jnp.float32)
    h = jnp.maximum(h + b2_ref[...], 0.0)

    # fc3: Linear(128, 128) + ReLU
    h = jnp.dot(h.astype(jnp.bfloat16), w3_ref[...],
                preferred_element_type=jnp.float32)
    h = jnp.maximum(h + b3_ref[...], 0.0)

    # dropout(p=0.5): identity in eval mode.
    # TODO(synk): training-mode dropout (pltpu.prng_* masking) not implemented.

    # classifier: Linear(128, num_class, bias=False), zero-padded to a
    # lane-dense (multiple-of-128) width so stores are unmasked full-lane vst;
    # the padded columns are sliced off in the wrapper.
    o_ref[...] = jnp.dot(h.astype(jnp.bfloat16), wc_ref[...],
                         preferred_element_type=jnp.float32)


def _choose_tile_b(B):
    """Pick the batch tile.

    Largest tile that (a) divides B, (b) is <= 1024 rows (~6 MB of buffers,
    safe on v5e 16 MiB / v6e 32 MiB / v7x 32 MiB scoped VMEM without raising
    limits), and (c) leaves >= 2 grid steps so both v7x TensorCores get work.
    For tiny B (no candidate leaves 2 steps) fall back to the whole batch in a
    single step, which avoids all pipeline prologue/epilogue overhead.
    """
    for cand in (1024, 512, 256, 128, 64, 32, 16, 8):
        if B % cand == 0 and B // cand >= 2:
            return cand
    return B


@functools.partial(jax.jit, static_argnames=("tile_b",))
def mlp_metric_forward(feat1, feat2, params, *, tile_b=None):
    B, D = feat1.shape
    w1t, b1, w2t, b2, w3t, b3, wct = params
    num_class = wct.shape[1]

    if tile_b is None:
        tile_b = _choose_tile_b(B)
    assert B % tile_b == 0, (B, tile_b)

    # Pre-cast matmul weights to bf16 (accumulation stays f32 in the kernel).
    w1b = w1t.astype(jnp.bfloat16)
    w2b = w2t.astype(jnp.bfloat16)
    w3b = w3t.astype(jnp.bfloat16)

    # Zero-pad (not garbage) the classifier to a lane-dense output width.
    nc_pad = max(LANE, ((num_class + LANE - 1) // LANE) * LANE)
    wcp = jnp.zeros((wct.shape[0], nc_pad), jnp.bfloat16)
    wcp = wcp.at[:, :num_class].set(wct.astype(jnp.bfloat16))

    grid = (B // tile_b,)

    feat_spec = pl.BlockSpec((tile_b, D), lambda i: (i, 0))

    # Weights / biases are grid-invariant: constant index_map -> the pipeline
    # keeps them resident instead of re-fetching each batch tile.
    def rep(arr):
        return pl.BlockSpec(arr.shape, lambda i: (0, 0))

    out_padded = pl.pallas_call(
        mlp_metric_kernel,
        out_shape=jax.ShapeDtypeStruct((B, nc_pad), jnp.float32),
        grid_spec=pltpu.PrefetchScalarGridSpec(
            num_scalar_prefetch=0,
            grid=grid,
            in_specs=[
                feat_spec,                       # feat1
                feat_spec,                       # feat2
                rep(w1b), rep(b1),               # fc1
                rep(w2b), rep(b2),               # fc2
                rep(w3b), rep(b3),               # fc3
                rep(wcp),                        # classifier (padded)
            ],
            out_specs=pl.BlockSpec((tile_b, nc_pad), lambda i: (i, 0)),
        ),
        compiler_params=pltpu.CompilerParams(
            dimension_semantics=("parallel",)),
    )(feat1, feat2, w1b, b1, w2b, b2, w3b, b3, wcp)

    return out_padded[:, :num_class]


def init_params(key, feature_dim=FEATURE_DIM, layer_dim=LAYER_DIM,
                num_class=NUM_CLASS):
    """Deterministic synthetic parameters mirroring nn.Linear init shapes.

    PyTorch Linear weight is (out, in); we store the transpose (in, out).
    Classifier is normal(std=0.001), bias-free, as in the module.
    """
    ks = jax.random.split(key, 7)

    def linear(kw, kb, fan_in, fan_out):
        bound = 1.0 / jnp.sqrt(fan_in)
        w = jax.random.uniform(kw, (fan_in, fan_out), jnp.float32, -bound, bound)
        b = jax.random.uniform(kb, (1, fan_out), jnp.float32, -bound, bound)
        return w, b

    w1t, b1 = linear(ks[0], ks[1], feature_dim, layer_dim)
    w2t, b2 = linear(ks[2], ks[3], layer_dim, layer_dim)
    w3t, b3 = linear(ks[4], ks[5], layer_dim, layer_dim)
    wct = 0.001 * jax.random.normal(ks[6], (layer_dim, num_class), jnp.float32)
    return (w1t, b1, w2t, b2, w3t, b3, wct)


def reference_forward(feat1, feat2, params):
    w1t, b1, w2t, b2, w3t, b3, wct = params
    x = jnp.abs(feat2 - feat1)
    h = jnp.maximum(x @ w1t + b1, 0.0)
    h = jnp.maximum(h @ w2t + b2, 0.0)
    h = jnp.maximum(h @ w3t + b3, 0.0)
    return h @ wct


if __name__ == "__main__":
    key = jax.random.PRNGKey(0)
    k1, k2, kp = jax.random.split(key, 3)

    B = 256  # small test batch; auto tile picks 128 -> 2 parallel grid steps
    feat1 = jax.random.normal(k1, (B, FEATURE_DIM), jnp.float32)
    feat2 = jax.random.normal(k2, (B, FEATURE_DIM), jnp.float32)
    params = init_params(kp)

    out = mlp_metric_forward(feat1, feat2, params)
    out = jax.block_until_ready(out)

    ref = reference_forward(feat1, feat2, params)
    assert out.shape == (B, NUM_CLASS), out.shape
    # bf16 MXU inputs (f32 accumulate) -> compare with a relaxed tolerance.
    rel_err = float(jnp.linalg.norm(out - ref) /
                    (jnp.linalg.norm(ref) + 1e-12))
    assert rel_err < 5e-2, f"relative error too large: {rel_err}"

    print("KERNEL_OK")
</pallas_src>

<mosaic_0001>
module attributes {stable_mosaic.version = 11 : i64} {
  func.func @mlp_metric_kernel(%arg0: i32, %arg1: memref<128x256xf32, #tpu.memory_space<vmem>>, %arg2: memref<128x256xf32, #tpu.memory_space<vmem>>, %arg3: memref<256x128xbf16, #tpu.memory_space<vmem>>, %arg4: memref<1x128xf32, #tpu.memory_space<vmem>>, %arg5: memref<128x128xbf16, #tpu.memory_space<vmem>>, %arg6: memref<1x128xf32, #tpu.memory_space<vmem>>, %arg7: memref<128x128xbf16, #tpu.memory_space<vmem>>, %arg8: memref<1x128xf32, #tpu.memory_space<vmem>>, %arg9: memref<128x128xbf16, #tpu.memory_space<vmem>>, %arg10: memref<128x128xf32, #tpu.memory_space<vmem>>) attributes {dimension_semantics = [#tpu.dimension_semantics<parallel>], iteration_bounds = array<i64: 2>, scalar_prefetch = 0 : i64, scratch_operands = 0 : i64, tpu.core_type = #tpu.core_type<tc>, window_params = [{transform_indices = @transform_0, window_bounds = array<i64: 128, 256>}, {transform_indices = @transform_1, window_bounds = array<i64: 128, 256>}, {pipeline_mode = #tpu.pipeline_mode<synchronous>, transform_indices = @transform_2, window_bounds = array<i64: 256, 128>}, {pipeline_mode = #tpu.pipeline_mode<synchronous>, transform_indices = @transform_3, window_bounds = array<i64: 1, 128>}, {pipeline_mode = #tpu.pipeline_mode<synchronous>, transform_indices = @transform_4, window_bounds = array<i64: 128, 128>}, {pipeline_mode = #tpu.pipeline_mode<synchronous>, transform_indices = @transform_5, window_bounds = array<i64: 1, 128>}, {pipeline_mode = #tpu.pipeline_mode<synchronous>, transform_indices = @transform_6, window_bounds = array<i64: 128, 128>}, {pipeline_mode = #tpu.pipeline_mode<synchronous>, transform_indices = @transform_7, window_bounds = array<i64: 1, 128>}, {pipeline_mode = #tpu.pipeline_mode<synchronous>, transform_indices = @transform_8, window_bounds = array<i64: 128, 128>}, {transform_indices = @transform_9, window_bounds = array<i64: 128, 128>}]} {
    %c0 = arith.constant 0 : index
    %c0_0 = arith.constant 0 : index
    %0 = vector.load %arg2[%c0, %c0_0] : memref<128x256xf32, #tpu.memory_space<vmem>>, vector<128x256xf32>
    %c0_1 = arith.constant 0 : index
    %c0_2 = arith.constant 0 : index
    %1 = vector.load %arg1[%c0_1, %c0_2] : memref<128x256xf32, #tpu.memory_space<vmem>>, vector<128x256xf32>
    %2 = arith.subf %0, %1 : vector<128x256xf32>
    %3 = math.absf %2 : vector<128x256xf32>
    %4 = arith.truncf %3 : vector<128x256xf32> to vector<128x256xbf16>
    %c0_3 = arith.constant 0 : index
    %c0_4 = arith.constant 0 : index
    %5 = vector.load %arg3[%c0_3, %c0_4] : memref<256x128xbf16, #tpu.memory_space<vmem>>, vector<256x128xbf16>
    %cst = arith.constant dense<0.000000e+00> : vector<128x128xf32>
    %6 = tpu.matmul %4, %5, %cst {dimension_numbers = #tpu.dot_dimension_numbers<[1], [0], [0], [1], [0, 0, 1, 1], [], []>} : vector<128x256xbf16>, vector<256x128xbf16>, vector<128x128xf32> -> vector<128x128xf32>
    %c0_5 = arith.constant 0 : index
    %c0_6 = arith.constant 0 : index
    %7 = vector.load %arg4[%c0_5, %c0_6] : memref<1x128xf32, #tpu.memory_space<vmem>>, vector<1x128xf32>
    %8 = vector.broadcast %7 : vector<1x128xf32> to vector<128x128xf32>
    %9 = arith.addf %6, %8 : vector<128x128xf32>
    %cst_7 = arith.constant 0.000000e+00 : f32
    %10 = vector.broadcast %cst_7 : f32 to vector<128x128xf32>
    %11 = arith.maximumf %9, %10 : vector<128x128xf32>
    %12 = arith.truncf %11 : vector<128x128xf32> to vector<128x128xbf16>
    %c0_8 = arith.constant 0 : index
    %c0_9 = arith.constant 0 : index
    %13 = vector.load %arg5[%c0_8, %c0_9] : memref<128x128xbf16, #tpu.memory_space<vmem>>, vector<128x128xbf16>
    %cst_10 = arith.constant dense<0.000000e+00> : vector<128x128xf32>
    %14 = tpu.matmul %12, %13, %cst_10 {dimension_numbers = #tpu.dot_dimension_numbers<[1], [0], [0], [1], [0, 0, 1, 1], [], []>} : vector<128x128xbf16>, vector<128x128xbf16>, vector<128x128xf32> -> vector<128x128xf32>
    %c0_11 = arith.constant 0 : index
    %c0_12 = arith.constant 0 : index
    %15 = vector.load %arg6[%c0_11, %c0_12] : memref<1x128xf32, #tpu.memory_space<vmem>>, vector<1x128xf32>
    %16 = vector.broadcast %15 : vector<1x128xf32> to vector<128x128xf32>
    %17 = arith.addf %14, %16 : vector<128x128xf32>
    %cst_13 = arith.constant 0.000000e+00 : f32
    %18 = vector.broadcast %cst_13 : f32 to vector<128x128xf32>
    %19 = arith.maximumf %17, %18 : vector<128x128xf32>
    %20 = arith.truncf %19 : vector<128x128xf32> to vector<128x128xbf16>
    %c0_14 = arith.constant 0 : index
    %c0_15 = arith.constant 0 : index
    %21 = vector.load %arg7[%c0_14, %c0_15] : memref<128x128xbf16, #tpu.memory_space<vmem>>, vector<128x128xbf16>
    %cst_16 = arith.constant dense<0.000000e+00> : vector<128x128xf32>
    %22 = tpu.matmul %20, %21, %cst_16 {dimension_numbers = #tpu.dot_dimension_numbers<[1], [0], [0], [1], [0, 0, 1, 1], [], []>} : vector<128x128xbf16>, vector<128x128xbf16>, vector<128x128xf32> -> vector<128x128xf32>
    %c0_17 = arith.constant 0 : index
    %c0_18 = arith.constant 0 : index
    %23 = vector.load %arg8[%c0_17, %c0_18] : memref<1x128xf32, #tpu.memory_space<vmem>>, vector<1x128xf32>
    %24 = vector.broadcast %23 : vector<1x128xf32> to vector<128x128xf32>
    %25 = arith.addf %22, %24 : vector<128x128xf32>
    %cst_19 = arith.constant 0.000000e+00 : f32
    %26 = vector.broadcast %cst_19 : f32 to vector<128x128xf32>
    %27 = arith.maximumf %25, %26 : vector<128x128xf32>
    %28 = arith.truncf %27 : vector<128x128xf32> to vector<128x128xbf16>
    %c0_20 = arith.constant 0 : index
    %c0_21 = arith.constant 0 : index
    %29 = vector.load %arg9[%c0_20, %c0_21] : memref<128x128xbf16, #tpu.memory_space<vmem>>, vector<128x128xbf16>
    %cst_22 = arith.constant dense<0.000000e+00> : vector<128x128xf32>
    %30 = tpu.matmul %28, %29, %cst_22 {dimension_numbers = #tpu.dot_dimension_numbers<[1], [0], [0], [1], [0, 0, 1, 1], [], []>} : vector<128x128xbf16>, vector<128x128xbf16>, vector<128x128xf32> -> vector<128x128xf32>
    %c0_23 = arith.constant 0 : index
    %c0_24 = arith.constant 0 : index
    %31 = vector.load %arg10[%c0_23, %c0_24] : memref<128x128xf32, #tpu.memory_space<vmem>>, vector<128x128xf32>
    tpu.vector_store %arg10[%c0_23, %c0_24], %30 {strides = array<i32>} : memref<128x128xf32, #tpu.memory_space<vmem>>, vector<128x128xf32>,
    return
  }
  func.func @transform_0(%arg0: i32) -> (i32, i32) {
    %c0_i32 = arith.constant 0 : i32
    %c0_i32_0 = arith.constant 0 : i32
    return %arg0, %c0_i32 : i32, i32
  }
  func.func @transform_1(%arg0: i32) -> (i32, i32) {
    %c0_i32 = arith.constant 0 : i32
    %c0_i32_0 = arith.constant 0 : i32
    return %arg0, %c0_i32 : i32, i32
  }
  func.func @transform_2(%arg0: i32) -> (i32, i32) {
    %c0_i32 = arith.constant 0 : i32
    %c0_i32_0 = arith.constant 0 : i32
    %c0_i32_1 = arith.constant 0 : i32
    return %c0_i32, %c0_i32_0 : i32, i32
  }
  func.func @transform_3(%arg0: i32) -> (i32, i32) {
    %c0_i32 = arith.constant 0 : i32
    %c0_i32_0 = arith.constant 0 : i32
    %c0_i32_1 = arith.constant 0 : i32
    return %c0_i32, %c0_i32_0 : i32, i32
  }
  func.func @transform_4(%arg0: i32) -> (i32, i32) {
    %c0_i32 = arith.constant 0 : i32
    %c0_i32_0 = arith.constant 0 : i32
    %c0_i32_1 = arith.constant 0 : i32
    return %c0_i32, %c0_i32_0 : i32, i32
  }
  func.func @transform_5(%arg0: i32) -> (i32, i32) {
    %c0_i32 = arith.constant 0 : i32
    %c0_i32_0 = arith.constant 0 : i32
    %c0_i32_1 = arith.constant 0 : i32
    return %c0_i32, %c0_i32_0 : i32, i32
  }
  func.func @transform_6(%arg0: i32) -> (i32, i32) {
    %c0_i32 = arith.constant 0 : i32
    %c0_i32_0 = arith.constant 0 : i32
    %c0_i32_1 = arith.constant 0 : i32
    return %c0_i32, %c0_i32_0 : i32, i32
  }
  func.func @transform_7(%arg0: i32) -> (i32, i32) {
    %c0_i32 = arith.constant 0 : i32
    %c0_i32_0 = arith.constant 0 : i32
    %c0_i32_1 = arith.constant 0 : i32
    return %c0_i32, %c0_i32_0 : i32, i32
  }
  func.func @transform_8(%arg0: i32) -> (i32, i32) {
    %c0_i32 = arith.constant 0 : i32
    %c0_i32_0 = arith.constant 0 : i32
    %c0_i32_1 = arith.constant 0 : i32
    return %c0_i32, %c0_i32_0 : i32, i32
  }
  func.func @transform_9(%arg0: i32) -> (i32, i32) {
    %c0_i32 = arith.constant 0 : i32
    %c0_i32_0 = arith.constant 0 : i32
    return %arg0, %c0_i32 : i32, i32
  }
}

</mosaic_0001>

<llo_original>
// kernel: mlp_metric_forward.1
$region0: #{mlp_metric_forward.1}
  #allocation0 [shape = 'u32[]', space=smem, size = 0x4, offset = 0x4, fixed_abs, tag = 'smem constant byte address 0x4 - core index']
  #allocation1 [shape = 'u32[144,128]{1,0:T(1,128)}', space=vmem, size = 0x12000, scoped, tag = 'internal scratch']
  %s0 = inlined_call_operand.vmem [shape: f32[256,256], index: 0, kind: input, shape index: {}]
  %s1 = inlined_call_operand.vmem [shape: f32[256,256], index: 1, kind: input, shape index: {}]
  %s2 = inlined_call_operand.vmem [shape: bf16[256,128], index: 2, kind: input, shape index: {}]
  %s3 = inlined_call_operand.vmem [shape: f32[1,128], index: 3, kind: input, shape index: {}]
  %s4 = inlined_call_operand.vmem [shape: bf16[128,128], index: 4, kind: input, shape index: {}]
  %s5 = inlined_call_operand.vmem [shape: f32[1,128], index: 5, kind: input, shape index: {}]
  %s6 = inlined_call_operand.vmem [shape: bf16[128,128], index: 6, kind: input, shape index: {}]
  %s7 = inlined_call_operand.vmem [shape: f32[1,128], index: 7, kind: input, shape index: {}]
  %s8 = inlined_call_operand.vmem [shape: bf16[128,128], index: 8, kind: input, shape index: {}]
  %s9 = inlined_call_operand.vmem [shape: f32[256,128], index: 9, kind: output, shape index: {}]
  %s10 = sld [smem:[#allocation0]]
  $region69: #{mlp_metric_forward.1} parent=0
    _
  %s12 = ssub.s32 1, %s10
  %s13 = scalar_select 0, %s12, %s10
  loop: start=0, step=1, limit=4
  $region2: #{mlp_metric_forward.1} parent=0 // loop_pre_header
    _
  $region3: #{mlp_metric_forward.1} parent=0 // loop_header
    %s15 = sphi 0, %s19
    %p16 = scmp.ge.s32.totalorder %s15, 4
    %s25 = sphi 0, %s27
    %s28 = sphi 0, %s25
    %s29 = sphi 0, %s28
    %s45 = sphi 0, %s29
    %s51 = sphi 0, %s53
    %s54 = sphi 0, %s51
    %s55 = sphi 0, %s54
    %s71 = sphi 0, %s55
    %s75 = sphi 0, %s75
    %s77 = sphi 0, %s75
    %s78 = sphi 0, %s77
    %s92 = sphi 0, %s78
    %s96 = sphi 0, %s96
    %s98 = sphi 0, %s96
    %s99 = sphi 0, %s98
    %s113 = sphi 0, %s99
    %s117 = sphi 0, %s117
    %s119 = sphi 0, %s117
    %s120 = sphi 0, %s119
    %s134 = sphi 0, %s120
    %s138 = sphi 0, %s138
    %s140 = sphi 0, %s138
    %s141 = sphi 0, %s140
    %s155 = sphi 0, %s141
    %s159 = sphi 0, %s159
    %s161 = sphi 0, %s159
    %s162 = sphi 0, %s161
    %s176 = sphi 0, %s162
    %s180 = sphi 0, %s180
    %s182 = sphi 0, %s180
    %s183 = sphi 0, %s182
    %s197 = sphi 0, %s183
    %s201 = sphi 0, %s201
    %s203 = sphi 0, %s201
    %s204 = sphi 0, %s203
    %s218 = sphi 0, %s204
    %s224 = sphi 0, %s226
    %s227 = sphi 0, %s224
    %s228 = sphi 0, %s227
    %s244 = sphi 0, %s228
  $region4: #{mlp_metric_forward.1} parent=0 // loop_header_branch
    %18 = sbr.rel (%p16) target = $region8
  $region5: #{mlp_metric_forward.1} parent=0 // loop_body
    %s20 = ssub.s32 %s15, 1
    %s21 = ssub.s32 %s15, 2
    %s22 = sadd.s32 %s15, 1
    %s23 = ssub.s32 %s15, %s22
    %p24 = scmp.eq.s32.totalorder %s23, 0
    %s26 = sadd.s32 %s25, 1
    %s27 = scalar_select %p24, %s25, %s26
    %p30 = pneg %p24
    %p31 = scmp.eq.s32.totalorder %s15, 1
    %p32 = por %p30, %p31
    %p33 = scmp.ne.s32.totalorder %s25, %s28
    %p34 = scmp.eq.s32.totalorder %s15, 0
    %p35 = por %p33, %p34
    %p36 = scmp.ne.s32.totalorder %s25, %s28
    %p37 = scmp.eq.s32.totalorder %s20, 1
    %p38 = por %p36, %p37
    %p39 = scmp.ne.s32.totalorder %s28, %s29
    %p40 = scmp.eq.s32.totalorder %s20, 0
    %p41 = por %p39, %p40
    %p42 = scmp.ne.s32.totalorder %s28, %s29
    %p43 = scmp.eq.s32.totalorder %s21, 1
    %p44 = por %p42, %p43
    %p46 = scmp.ne.s32.totalorder %s29, %s45
    %p47 = scmp.eq.s32.totalorder %s21, 0
    %p48 = por %p46, %p47
    %s49 = ssub.s32 %s15, %s22
    %p50 = scmp.eq.s32.totalorder %s49, 0
    %s52 = sadd.s32 %s51, 1
    %s53 = scalar_select %p50, %s51, %s52
    %p56 = pneg %p50
    %p57 = scmp.eq.s32.totalorder %s15, 1
    %p58 = por %p56, %p57
    %p59 = scmp.ne.s32.totalorder %s51, %s54
    %p60 = scmp.eq.s32.totalorder %s15, 0
    %p61 = por %p59, %p60
    %p62 = scmp.ne.s32.totalorder %s51, %s54
    %p63 = scmp.eq.s32.totalorder %s20, 1
    %p64 = por %p62, %p63
    %p65 = scmp.ne.s32.totalorder %s54, %s55
    %p66 = scmp.eq.s32.totalorder %s20, 0
    %p67 = por %p65, %p66
    %p68 = scmp.ne.s32.totalorder %s54, %s55
    %p69 = scmp.eq.s32.totalorder %s21, 1
    %p70 = por %p68, %p69
    %p72 = scmp.ne.s32.totalorder %s55, %s71
    %p73 = scmp.eq.s32.totalorder %s21, 0
    %p74 = por %p72, %p73
    %s76 = sadd.s32 %s75, 1
    %p79 = scmp.eq.s32.totalorder %s15, 1
    %p80 = scmp.ne.s32.totalorder %s75, %s77
    %p81 = scmp.eq.s32.totalorder %s15, 0
    %p82 = por %p80, %p81
    %p83 = scmp.ne.s32.totalorder %s75, %s77
    %p84 = scmp.eq.s32.totalorder %s20, 1
    %p85 = por %p83, %p84
    %p86 = scmp.ne.s32.totalorder %s77, %s78
    %p87 = scmp.eq.s32.totalorder %s20, 0
    %p88 = por %p86, %p87
    %p89 = scmp.ne.s32.totalorder %s77, %s78
    %p90 = scmp.eq.s32.totalorder %s21, 1
    %p91 = por %p89, %p90
    %p93 = scmp.ne.s32.totalorder %s78, %s92
    %p94 = scmp.eq.s32.totalorder %s21, 0
    %p95 = por %p93, %p94
    %s97 = sadd.s32 %s96, 1
    %p100 = scmp.eq.s32.totalorder %s15, 1
    %p101 = scmp.ne.s32.totalorder %s96, %s98
    %p102 = scmp.eq.s32.totalorder %s15, 0
    %p103 = por %p101, %p102
    %p104 = scmp.ne.s32.totalorder %s96, %s98
    %p105 = scmp.eq.s32.totalorder %s20, 1
    %p106 = por %p104, %p105
    %p107 = scmp.ne.s32.totalorder %s98, %s99
    %p108 = scmp.eq.s32.totalorder %s20, 0
    %p109 = por %p107, %p108
    %p110 = scmp.ne.s32.totalorder %s98, %s99
    %p111 = scmp.eq.s32.totalorder %s21, 1
    %p112 = por %p110, %p111
    %p114 = scmp.ne.s32.totalorder %s99, %s113
    %p115 = scmp.eq.s32.totalorder %s21, 0
    %p116 = por %p114, %p115
    %s118 = sadd.s32 %s117, 1
    %p121 = scmp.eq.s32.totalorder %s15, 1
    %p122 = scmp.ne.s32.totalorder %s117, %s119
    %p123 = scmp.eq.s32.totalorder %s15, 0
    %p124 = por %p122, %p123
    %p125 = scmp.ne.s32.totalorder %s117, %s119
    %p126 = scmp.eq.s32.totalorder %s20, 1
    %p127 = por %p125, %p126
    %p128 = scmp.ne.s32.totalorder %s119, %s120
    %p129 = scmp.eq.s32.totalorder %s20, 0
    %p130 = por %p128, %p129
    %p131 = scmp.ne.s32.totalorder %s119, %s120
    %p132 = scmp.eq.s32.totalorder %s21, 1
    %p133 = por %p131, %p132
    %p135 = scmp.ne.s32.totalorder %s120, %s134
    %p136 = scmp.eq.s32.totalorder %s21, 0
    %p137 = por %p135, %p136
    %s139 = sadd.s32 %s138, 1
    %p142 = scmp.eq.s32.totalorder %s15, 1
    %p143 = scmp.ne.s32.totalorder %s138, %s140
    %p144 = scmp.eq.s32.totalorder %s15, 0
    %p145 = por %p143, %p144
    %p146 = scmp.ne.s32.totalorder %s138, %s140
    %p147 = scmp.eq.s32.totalorder %s20, 1
    %p148 = por %p146, %p147
    %p149 = scmp.ne.s32.totalorder %s140, %s141
    %p150 = scmp.eq.s32.totalorder %s20, 0
    %p151 = por %p149, %p150
    %p152 = scmp.ne.s32.totalorder %s140, %s141
    %p153 = scmp.eq.s32.totalorder %s21, 1
    %p154 = por %p152, %p153
    %p156 = scmp.ne.s32.totalorder %s141, %s155
    %p157 = scmp.eq.s32.totalorder %s21, 0
    %p158 = por %p156, %p157
    %s160 = sadd.s32 %s159, 1
    %p163 = scmp.eq.s32.totalorder %s15, 1
    %p164 = scmp.ne.s32.totalorder %s159, %s161
    %p165 = scmp.eq.s32.totalorder %s15, 0
    %p166 = por %p164, %p165
    %p167 = scmp.ne.s32.totalorder %s159, %s161
    %p168 = scmp.eq.s32.totalorder %s20, 1
    %p169 = por %p167, %p168
    %p170 = scmp.ne.s32.totalorder %s161, %s162
    %p171 = scmp.eq.s32.totalorder %s20, 0
    %p172 = por %p170, %p171
    %p173 = scmp.ne.s32.totalorder %s161, %s162
    %p174 = scmp.eq.s32.totalorder %s21, 1
    %p175 = por %p173, %p174
    %p177 = scmp.ne.s32.totalorder %s162, %s176
    %p178 = scmp.eq.s32.totalorder %s21, 0
    %p179 = por %p177, %p178
    %s181 = sadd.s32 %s180, 1
    %p184 = scmp.eq.s32.totalorder %s15, 1
    %p185 = scmp.ne.s32.totalorder %s180, %s182
    %p186 = scmp.eq.s32.totalorder %s15, 0
    %p187 = por %p185, %p186
    %p188 = scmp.ne.s32.totalorder %s180, %s182
    %p189 = scmp.eq.s32.totalorder %s20, 1
    %p190 = por %p188, %p189
    %p191 = scmp.ne.s32.totalorder %s182, %s183
    %p192 = scmp.eq.s32.totalorder %s20, 0
    %p193 = por %p191, %p192
    %p194 = scmp.ne.s32.totalorder %s182, %s183
    %p195 = scmp.eq.s32.totalorder %s21, 1
    %p196 = por %p194, %p195
    %p198 = scmp.ne.s32.totalorder %s183, %s197
    %p199 = scmp.eq.s32.totalorder %s21, 0
    %p200 = por %p198, %p199
    %s202 = sadd.s32 %s201, 1
    %p205 = scmp.eq.s32.totalorder %s15, 1
    %p206 = scmp.ne.s32.totalorder %s201, %s203
    %p207 = scmp.eq.s32.totalorder %s15, 0
    %p208 = por %p206, %p207
    %p209 = scmp.ne.s32.totalorder %s201, %s203
    %p210 = scmp.eq.s32.totalorder %s20, 1
    %p211 = por %p209, %p210
    %p212 = scmp.ne.s32.totalorder %s203, %s204
    %p213 = scmp.eq.s32.totalorder %s20, 0
    %p214 = por %p212, %p213
    %p215 = scmp.ne.s32.totalorder %s203, %s204
    %p216 = scmp.eq.s32.totalorder %s21, 1
    %p217 = por %p215, %p216
    %p219 = scmp.ne.s32.totalorder %s204, %s218
    %p220 = scmp.eq.s32.totalorder %s21, 0
    %p221 = por %p219, %p220
    %s222 = ssub.s32 %s15, %s22
    %p223 = scmp.eq.s32.totalorder %s222, 0
    %s225 = sadd.s32 %s224, 1
    %s226 = scalar_select %p223, %s224, %s225
    %p229 = pneg %p223
    %p230 = scmp.eq.s32.totalorder %s15, 1
    %p231 = por %p229, %p230
    %p232 = scmp.ne.s32.totalorder %s224, %s227
    %p233 = scmp.eq.s32.totalorder %s15, 0
    %p234 = por %p232, %p233
    %p235 = scmp.ne.s32.totalorder %s224, %s227
    %p236 = scmp.eq.s32.totalorder %s20, 1
    %p237 = por %p235, %p236
    %p238 = scmp.ne.s32.totalorder %s227, %s228
    %p239 = scmp.eq.s32.totalorder %s20, 0
    %p240 = por %p238, %p239
    %p241 = scmp.ne.s32.totalorder %s227, %s228
    %p242 = scmp.eq.s32.totalorder %s21, 1
    %p243 = por %p241, %p242
    %p245 = scmp.ne.s32.totalorder %s228, %s244
    %p246 = scmp.eq.s32.totalorder %s21, 0
    %p247 = por %p245, %p246
    %p248 = scmp.le.s32.totalorder 1, %s15
    %p249 = scmp.lt.s32.totalorder %s15, 3
    %p250 = pnand %p248, %p249
    %p251 = pneg %p250
    // Predicated region
    $region9: #{mlp_metric_forward.1} parent=5 // pred_check
      _
    $region10: #{mlp_metric_forward.1} parent=5 // pred_check_branch
      %253 = sbr.rel (%p250) target = $region12
    $region11: #{mlp_metric_forward.1} parent=5 // pred_region
      %s254 = ssub.s32 %s15, 1
      // Predicated region
      $region13: #{mlp_metric_forward.1} parent=11 // pred_check
        %p255 = pneg %p88
      $region14: #{mlp_metric_forward.1} parent=11 // pred_check_branch
        %257 = sbr.rel (%p255) target = $region16
      $region15: #{mlp_metric_forward.1} parent=11 // pred_region
        _
      $region16: #{mlp_metric_forward.1} parent=11 // pred_fallthru
        _
      // Predicated region
      $region17: #{mlp_metric_forward.1} parent=11 // pred_check
        %p258 = pneg %p109
      $region18: #{mlp_metric_forward.1} parent=11 // pred_check_branch
        %260 = sbr.rel (%p258) target = $region20
      $region19: #{mlp_metric_forward.1} parent=11 // pred_region
        _
      $region20: #{mlp_metric_forward.1} parent=11 // pred_fallthru
        _
      // Predicated region
      $region21: #{mlp_metric_forward.1} parent=11 // pred_check
        %p261 = pneg %p130
      $region22: #{mlp_metric_forward.1} parent=11 // pred_check_branch
        %263 = sbr.rel (%p261) target = $region24
      $region23: #{mlp_metric_forward.1} parent=11 // pred_region
        _
      $region24: #{mlp_metric_forward.1} parent=11 // pred_fallthru
        _
      // Predicated region
      $region25: #{mlp_metric_forward.1} parent=11 // pred_check
        %p264 = pneg %p151
      $region26: #{mlp_metric_forward.1} parent=11 // pred_check_branch
        %266 = sbr.rel (%p264) target = $region28
      $region27: #{mlp_metric_forward.1} parent=11 // pred_region
        _
      $region28: #{mlp_metric_forward.1} parent=11 // pred_fallthru
        _
      // Predicated region
      $region29: #{mlp_metric_forward.1} parent=11 // pred_check
        %p267 = pneg %p172
      $region30: #{mlp_metric_forward.1} parent=11 // pred_check_branch
        %269 = sbr.rel (%p267) target = $region32
      $region31: #{mlp_metric_forward.1} parent=11 // pred_region
        _
      $region32: #{mlp_metric_forward.1} parent=11 // pred_fallthru
        _
      // Predicated region
      $region33: #{mlp_metric_forward.1} parent=11 // pred_check
        %p270 = pneg %p193
      $region34: #{mlp_metric_forward.1} parent=11 // pred_check_branch
        %272 = sbr.rel (%p270) target = $region36
      $region35: #{mlp_metric_forward.1} parent=11 // pred_region
        _
      $region36: #{mlp_metric_forward.1} parent=11 // pred_fallthru
        _
      // Predicated region
      $region37: #{mlp_metric_forward.1} parent=11 // pred_check
        %p273 = pneg %p214
      $region38: #{mlp_metric_forward.1} parent=11 // pred_check_branch
        %275 = sbr.rel (%p273) target = $region40
      $region39: #{mlp_metric_forward.1} parent=11 // pred_region
        _
      $region40: #{mlp_metric_forward.1} parent=11 // pred_fallthru
        _
    $region12: #{mlp_metric_forward.1} parent=5 // pred_fallthru
      _
    %p276 = scmp.lt.s32.totalorder %s15, 2
    // Predicated region
    $region41: #{mlp_metric_forward.1} parent=5 // pred_check
      %p277 = pneg %p276
    $region42: #{mlp_metric_forward.1} parent=5 // pred_check_branch
      %279 = sbr.rel (%p277) target = $region44
    $region43: #{mlp_metric_forward.1} parent=5 // pred_region
      // Predicated region
      $region45: #{mlp_metric_forward.1} parent=43 // pred_check
        %p280 = pneg %p35
      $region46: #{mlp_metric_forward.1} parent=43 // pred_check_branch
        %282 = sbr.rel (%p280) target = $region48
      $region47: #{mlp_metric_forward.1} parent=43 // pred_region
        %s283 = smul.u32 16, %s15
        %p284 = scmp.lt.s32.totalorder %s283, 31
        %s285 = scalar_select %p284, %s283, 31
        %s286 = smul.addr %s285, 2
        %s287 = smul.addr %s286, 8
        %s288 = scalar_lea.vmem %s0, %s287
        %s289 = smul.u32 16, %s15
      $region48: #{mlp_metric_forward.1} parent=43 // pred_fallthru
        _
      // Predicated region
      $region49: #{mlp_metric_forward.1} parent=43 // pred_check
        %p290 = pneg %p61
      $region50: #{mlp_metric_forward.1} parent=43 // pred_check_branch
        %292 = sbr.rel (%p290) target = $region52
      $region51: #{mlp_metric_forward.1} parent=43 // pred_region
        %s293 = smul.u32 16, %s15
        %p294 = scmp.lt.s32.totalorder %s293, 31
        %s295 = scalar_select %p294, %s293, 31
        %s296 = smul.addr %s295, 2
        %s297 = smul.addr %s296, 8
        %s298 = scalar_lea.vmem %s1, %s297
        %s299 = smul.u32 16, %s15
      $region52: #{mlp_metric_forward.1} parent=43 // pred_fallthru
        _
    $region44: #{mlp_metric_forward.1} parent=5 // pred_fallthru
      _
    %p300 = scmp.le.s32.totalorder 1, %s15
    %p301 = scmp.lt.s32.totalorder %s15, 3
    %p302 = pnand %p300, %p301
    %p303 = pneg %p302
    // Predicated region
    $region53: #{mlp_metric_forward.1} parent=5 // pred_check
      _
    $region54: #{mlp_metric_forward.1} parent=5 // pred_check_branch
      %305 = sbr.rel (%p302) target = $region56
    $region55: #{mlp_metric_forward.1} parent=5 // pred_region
      %s306 = ssub.s32 %s15, 1
      %s307 = smul.u32 16, %s20
      %p308 = scmp.lt.s32.totalorder %s307, 31
      %s309 = scalar_select %p308, %s307, 31
      %s310 = smul.addr %s309, 2
      %s311 = smul.addr %s310, 8
      %s312 = scalar_lea.vmem %s0, %s311
      %p313 = pneg %p41
      %p314 = pneg %p38
      %s315 = smul.u32 16, %s20
      %p316 = scmp.lt.s32.totalorder %s315, 31
      %s317 = scalar_select %p316, %s315, 31
      %s318 = smul.addr %s317, 2
      %s319 = smul.addr %s318, 8
      %s320 = scalar_lea.vmem %s1, %s319
      %p321 = pneg %p67
      %p322 = pneg %p64
      %p323 = pneg %p88
      %p324 = pneg %p85
      %p325 = pneg %p109
      %p326 = pneg %p106
      %p327 = pneg %p130
      %p328 = pneg %p127
      %p329 = pneg %p151
      %p330 = pneg %p148
      %p331 = pneg %p172
      %p332 = pneg %p169
      %p333 = pneg %p193
      %p334 = pneg %p190
      %p335 = pneg %p214
      %p336 = pneg %p211
      %p337 = pneg %p240
      %p338 = pneg %p237
      %s339 = smul.u32 16, %s20
      %p340 = scmp.lt.s32.totalorder %s339, 31
      %s341 = scalar_select %p340, %s339, 31
      %s342 = smul.addr %s341, 8
      %s343 = scalar_lea.vmem %s9, %s342
      %s344 = smul.u32 16, %s20
      %p345 = scmp.lt.s32.totalorder %s344, 31
      %s346 = scalar_select %p345, %s344, 31
      %s347 = smul.addr %s346, 2
      %s348 = smul.addr %s347, 8
      %s349 = scalar_lea.vmem %s0, %s348
      %s350 = smul.u32 16, %s20
      %s351 = smul.u32 16, %s20
      %p352 = scmp.lt.s32.totalorder %s351, 31
      %s353 = scalar_select %p352, %s351, 31
      %s354 = smul.addr %s353, 2
      %s355 = smul.addr %s354, 8
      %s356 = scalar_lea.vmem %s1, %s355
      %s357 = smul.u32 16, %s20
      %s358 = smul.u32 16, %s20
      %p359 = scmp.lt.s32.totalorder %s358, 31
      %s360 = scalar_select %p359, %s358, 31
      %s361 = smul.addr %s360, 8
      %s362 = scalar_lea.vmem %s9, %s361
      %s363 = smul.u32 16, %s20
      %v365 = vld [vmem:[%s356] sm:$0xff]
      %v366 = vld [vmem:[%s356 + $0x8] sm:$0xff]
      %v367 = vld [vmem:[%s356 + $0x10] sm:$0xff]
      %v368 = vld [vmem:[%s356 + $0x18] sm:$0xff]
      %v369 = vld [vmem:[%s356 + $0x20] sm:$0xff]
      %v370 = vld [vmem:[%s356 + $0x28] sm:$0xff]
      %v371 = vld [vmem:[%s356 + $0x30] sm:$0xff]
      %v372 = vld [vmem:[%s356 + $0x38] sm:$0xff]
      %v373 = vld [vmem:[%s356 + $0x40] sm:$0xff]
      %v374 = vld [vmem:[%s356 + $0x48] sm:$0xff]
      %v375 = vld [vmem:[%s356 + $0x50] sm:$0xff]
      %v376 = vld [vmem:[%s356 + $0x58] sm:$0xff]
      %v377 = vld [vmem:[%s356 + $0x60] sm:$0xff]
      %v378 = vld [vmem:[%s356 + $0x68] sm:$0xff]
      %v379 = vld [vmem:[%s356 + $0x70] sm:$0xff]
      %v380 = vld [vmem:[%s356 + $0x78] sm:$0xff]
      %v381 = vld [vmem:[%s356 + $0x80] sm:$0xff]
      %v382 = vld [vmem:[%s356 + $0x88] sm:$0xff]
      %v383 = vld [vmem:[%s356 + $0x90] sm:$0xff]
      %v384 = vld [vmem:[%s356 + $0x98] sm:$0xff]
      %v385 = vld [vmem:[%s356 + $0xa0] sm:$0xff]
      %v386 = vld [vmem:[%s356 + $0xa8] sm:$0xff]
      %v387 = vld [vmem:[%s356 + $0xb0] sm:$0xff]
      %v388 = vld [vmem:[%s356 + $0xb8] sm:$0xff]
      %v389 = vld [vmem:[%s356 + $0xc0] sm:$0xff]
      %v390 = vld [vmem:[%s356 + $0xc8] sm:$0xff]
      %v391 = vld [vmem:[%s356 + $0xd0] sm:$0xff]
      %v392 = vld [vmem:[%s356 + $0xd8] sm:$0xff]
      %v393 = vld [vmem:[%s356 + $0xe0] sm:$0xff]
      %v394 = vld [vmem:[%s356 + $0xe8] sm:$0xff]
      %v395 = vld [vmem:[%s356 + $0xf0] sm:$0xff]
      %v396 = vld [vmem:[%s356 + $0xf8] sm:$0xff]
      %v397 = vld [vmem:[%s349] sm:$0xff]
      %v398 = vld [vmem:[%s349 + $0x8] sm:$0xff]
      %v399 = vld [vmem:[%s349 + $0x10] sm:$0xff]
      %v400 = vld [vmem:[%s349 + $0x18] sm:$0xff]
      %v401 = vld [vmem:[%s349 + $0x20] sm:$0xff]
      %v402 = vld [vmem:[%s349 + $0x28] sm:$0xff]
      %v403 = vld [vmem:[%s349 + $0x30] sm:$0xff]
      %v404 = vld [vmem:[%s349 + $0x38] sm:$0xff]
      %v405 = vld [vmem:[%s349 + $0x40] sm:$0xff]
      %v406 = vld [vmem:[%s349 + $0x48] sm:$0xff]
      %v407 = vld [vmem:[%s349 + $0x50] sm:$0xff]
      %v408 = vld [vmem:[%s349 + $0x58] sm:$0xff]
      %v409 = vld [vmem:[%s349 + $0x60] sm:$0xff]
      %v410 = vld [vmem:[%s349 + $0x68] sm:$0xff]
      %v411 = vld [vmem:[%s349 + $0x70] sm:$0xff]
      %v412 = vld [vmem:[%s349 + $0x78] sm:$0xff]
      %v413 = vld [vmem:[%s349 + $0x80] sm:$0xff]
      %v414 = vld [vmem:[%s349 + $0x88] sm:$0xff]
      %v415 = vld [vmem:[%s349 + $0x90] sm:$0xff]
      %v416 = vld [vmem:[%s349 + $0x98] sm:$0xff]
      %v417 = vld [vmem:[%s349 + $0xa0] sm:$0xff]
      %v418 = vld [vmem:[%s349 + $0xa8] sm:$0xff]
      %v419 = vld [vmem:[%s349 + $0xb0] sm:$0xff]
      %v420 = vld [vmem:[%s349 + $0xb8] sm:$0xff]
      %v421 = vld [vmem:[%s349 + $0xc0] sm:$0xff]
      %v422 = vld [vmem:[%s349 + $0xc8] sm:$0xff]
      %v423 = vld [vmem:[%s349 + $0xd0] sm:$0xff]
      %v424 = vld [vmem:[%s349 + $0xd8] sm:$0xff]
      %v425 = vld [vmem:[%s349 + $0xe0] sm:$0xff]
      %v426 = vld [vmem:[%s349 + $0xe8] sm:$0xff]
      %v427 = vld [vmem:[%s349 + $0xf0] sm:$0xff]
      %v428 = vld [vmem:[%s349 + $0xf8] sm:$0xff]
      %v429 = vsub.f32 %v365, %v397
      %v430 = vsub.f32 %v366, %v398
      %v431 = vsub.f32 %v367, %v399
      %v432 = vsub.f32 %v368, %v400
      %v433 = vsub.f32 %v369, %v401
      %v434 = vsub.f32 %v370, %v402
      %v435 = vsub.f32 %v371, %v403
      %v436 = vsub.f32 %v372, %v404
      %v437 = vsub.f32 %v373, %v405
      %v438 = vsub.f32 %v374, %v406
      %v439 = vsub.f32 %v375, %v407
      %v440 = vsub.f32 %v376, %v408
      %v441 = vsub.f32 %v377, %v409
      %v442 = vsub.f32 %v378, %v410
      %v443 = vsub.f32 %v379, %v411
      %v444 = vsub.f32 %v380, %v412
      %v445 = vsub.f32 %v381, %v413
      %v446 = vsub.f32 %v382, %v414
      %v447 = vsub.f32 %v383, %v415
      %v448 = vsub.f32 %v384, %v416
      %v449 = vsub.f32 %v385, %v417
      %v450 = vsub.f32 %v386, %v418
      %v451 = vsub.f32 %v387, %v419
      %v452 = vsub.f32 %v388, %v420
      %v453 = vsub.f32 %v389, %v421
      %v454 = vsub.f32 %v390, %v422
      %v455 = vsub.f32 %v391, %v423
      %v456 = vsub.f32 %v392, %v424
      %v457 = vsub.f32 %v393, %v425
      %v458 = vsub.f32 %v394, %v426
      %v459 = vsub.f32 %v395, %v427
      %v460 = vsub.f32 %v396, %v428
      %v461 = vand.u32 2147483647, %v429
      %v462 = vand.u32 2147483647, %v430
      %v463 = vand.u32 2147483647, %v431
      %v464 = vand.u32 2147483647, %v432
      %v465 = vand.u32 2147483647, %v433
      %v466 = vand.u32 2147483647, %v434
      %v467 = vand.u32 2147483647, %v435
      %v468 = vand.u32 2147483647, %v436
      %v469 = vand.u32 2147483647, %v437
      %v470 = vand.u32 2147483647, %v438
      %v471 = vand.u32 2147483647, %v439
      %v472 = vand.u32 2147483647, %v440
      %v473 = vand.u32 2147483647, %v441
      %v474 = vand.u32 2147483647, %v442
      %v475 = vand.u32 2147483647, %v443
      %v476 = vand.u32 2147483647, %v444
      %v477 = vand.u32 2147483647, %v445
      %v478 = vand.u32 2147483647, %v446
      %v479 = vand.u32 2147483647, %v447
      %v480 = vand.u32 2147483647, %v448
      %v481 = vand.u32 2147483647, %v449
      %v482 = vand.u32 2147483647, %v450
      %v483 = vand.u32 2147483647, %v451
      %v484 = vand.u32 2147483647, %v452
      %v485 = vand.u32 2147483647, %v453
      %v486 = vand.u32 2147483647, %v454
      %v487 = vand.u32 2147483647, %v455
      %v488 = vand.u32 2147483647, %v456
      %v489 = vand.u32 2147483647, %v457
      %v490 = vand.u32 2147483647, %v458
      %v491 = vand.u32 2147483647, %v459
      %v492 = vand.u32 2147483647, %v460
      %v493 = vpack.c.bf16 %v463, %v461
      %v494 = vpack.c.bf16 %v464, %v462
      %v495 = vpack.c.bf16 %v467, %v465
      %v496 = vpack.c.bf16 %v468, %v466
      %v497 = vpack.c.bf16 %v471, %v469
      %v498 = vpack.c.bf16 %v472, %v470
      %v499 = vpack.c.bf16 %v475, %v473
      %v500 = vpack.c.bf16 %v476, %v474
      %v501 = vpack.c.bf16 %v479, %v477
      %v502 = vpack.c.bf16 %v480, %v478
      %v503 = vpack.c.bf16 %v483, %v481
      %v504 = vpack.c.bf16 %v484, %v482
      %v505 = vpack.c.bf16 %v487, %v485
      %v506 = vpack.c.bf16 %v488, %v486
      %v507 = vpack.c.bf16 %v491, %v489
      %v508 = vpack.c.bf16 %v492, %v490
      %v509 = vld [vmem:[%s2] sm:$0xf]
      %v510 = vld [vmem:[%s2 + $0x4] sm:$0xf]
      %v511 = vld [vmem:[%s2 + $0x8] sm:$0xf]
      %v512 = vld [vmem:[%s2 + $0xc] sm:$0xf]
      %v513 = vld [vmem:[%s2 + $0x10] sm:$0xf]
      %v514 = vld [vmem:[%s2 + $0x14] sm:$0xf]
      %v515 = vld [vmem:[%s2 + $0x18] sm:$0xf]
      %v516 = vld [vmem:[%s2 + $0x1c] sm:$0xf]
      %v517 = vld [vmem:[%s2 + $0x20] sm:$0xf]
      %v518 = vld [vmem:[%s2 + $0x24] sm:$0xf]
      %v519 = vld [vmem:[%s2 + $0x28] sm:$0xf]
      %v520 = vld [vmem:[%s2 + $0x2c] sm:$0xf]
      %v521 = vld [vmem:[%s2 + $0x30] sm:$0xf]
      %v522 = vld [vmem:[%s2 + $0x34] sm:$0xf]
      %v523 = vld [vmem:[%s2 + $0x38] sm:$0xf]
      %v524 = vld [vmem:[%s2 + $0x3c] sm:$0xf]
      %v525 = vld [vmem:[%s2 + $0x40] sm:$0xf]
      %v526 = vld [vmem:[%s2 + $0x44] sm:$0xf]
      %v527 = vld [vmem:[%s2 + $0x48] sm:$0xf]
      %v528 = vld [vmem:[%s2 + $0x4c] sm:$0xf]
      %v529 = vld [vmem:[%s2 + $0x50] sm:$0xf]
      %v530 = vld [vmem:[%s2 + $0x54] sm:$0xf]
      %v531 = vld [vmem:[%s2 + $0x58] sm:$0xf]
      %v532 = vld [vmem:[%s2 + $0x5c] sm:$0xf]
      %v533 = vld [vmem:[%s2 + $0x60] sm:$0xf]
      %v534 = vld [vmem:[%s2 + $0x64] sm:$0xf]
      %v535 = vld [vmem:[%s2 + $0x68] sm:$0xf]
      %v536 = vld [vmem:[%s2 + $0x6c] sm:$0xf]
      %v537 = vld [vmem:[%s2 + $0x70] sm:$0xf]
      %v538 = vld [vmem:[%s2 + $0x74] sm:$0xf]
      %v539 = vld [vmem:[%s2 + $0x78] sm:$0xf]
      %v540 = vld [vmem:[%s2 + $0x7c] sm:$0xf]
      %v541 = vld [vmem:[%s3] sm:$0x1]
      %v543 = vlaneseq
      %v544 = vshrl.u32 %v543, 7
      %v545 = vsub.s32 0, %v544
      %v546 = vrot.slane %v541, %v545
      %v580 = vunpack.c.l.b16 %v509
      %v581 = vunpack.c.l.b16 %v510
      %v582 = vunpack.c.l.b16 %v511
      %v583 = vunpack.c.l.b16 %v512
      %v584 = vunpack.c.l.b16 %v513
      %v585 = vunpack.c.l.b16 %v514
      %v586 = vunpack.c.l.b16 %v515
      %v587 = vunpack.c.l.b16 %v516
      %v588 = vunpack.c.l.b16 %v517
      %v589 = vunpack.c.l.b16 %v518
      %v590 = vunpack.c.l.b16 %v519
      %v591 = vunpack.c.l.b16 %v520
      %v592 = vunpack.c.l.b16 %v521
      %v593 = vunpack.c.l.b16 %v522
      %v594 = vunpack.c.l.b16 %v523
      %v595 = vunpack.c.l.b16 %v524
      %v596 = vunpack.c.l.b16 %v525
      %v597 = vunpack.c.l.b16 %v526
      %v598 = vunpack.c.l.b16 %v527
      %v599 = vunpack.c.l.b16 %v528
      %v600 = vunpack.c.l.b16 %v529
      %v601 = vunpack.c.l.b16 %v530
      %v602 = vunpack.c.l.b16 %v531
      %v603 = vunpack.c.l.b16 %v532
      %v604 = vunpack.c.l.b16 %v533
      %v605 = vunpack.c.l.b16 %v534
      %v606 = vunpack.c.l.b16 %v535
      %v607 = vunpack.c.l.b16 %v536
      %v608 = vunpack.c.l.b16 %v537
      %v609 = vunpack.c.l.b16 %v538
      %v610 = vunpack.c.l.b16 %v539
      %v611 = vunpack.c.l.b16 %v540
      %v612 = vpack.c.b16 %v581, %v580
      %v613 = vpack.c.b16 %v583, %v582
      %v614 = vpack.c.b16 %v585, %v584
      %v615 = vpack.c.b16 %v587, %v586
      %v616 = vpack.c.b16 %v589, %v588
      %v617 = vpack.c.b16 %v591, %v590
      %v618 = vpack.c.b16 %v593, %v592
      %v619 = vpack.c.b16 %v595, %v594
      %v620 = vpack.c.b16 %v597, %v596
      %v621 = vpack.c.b16 %v599, %v598
      %v622 = vpack.c.b16 %v601, %v600
      %v623 = vpack.c.b16 %v603, %v602
      %v624 = vpack.c.b16 %v605, %v604
      %v625 = vpack.c.b16 %v607, %v606
      %v626 = vpack.c.b16 %v609, %v608
      %v627 = vpack.c.b16 %v611, %v610
      %644 = vmatprep.subr.bf16.mxu0 0
      %645 = vmatpush1.bf16.msra.mxu0 %v612
      %646 = vmatprep.subr.bf16.mxu0 0
      %647 = vmatpush1.bf16.msra.mxu0 %v613
      %648 = vmatprep.subr.bf16.mxu0 0
      %649 = vmatpush1.bf16.msra.mxu0 %v614
      %650 = vmatprep.subr.bf16.mxu0 0
      %651 = vmatpush1.bf16.msra.mxu0 %v615
      %652 = vmatprep.subr.bf16.mxu0 0
      %653 = vmatpush1.bf16.msra.mxu0 %v616
      %654 = vmatprep.subr.bf16.mxu0 0
      %655 = vmatpush1.bf16.msra.mxu0 %v617
      %656 = vmatprep.subr.bf16.mxu0 0
      %657 = vmatpush1.bf16.msra.mxu0 %v618
      %658 = vmatprep.subr.bf16.mxu0 0
      %659 = vmatpush1.bf16.msra.mxu0 %v619
      %660 = vmatprep.subr.bf16.mxu0 0
      %661 = vmatpush1.bf16.msra.mxu0 %v620
      %662 = vmatprep.subr.bf16.mxu0 0
      %663 = vmatpush1.bf16.msra.mxu0 %v621
      %664 = vmatprep.subr.bf16.mxu0 0
      %665 = vmatpush1.bf16.msra.mxu0 %v622
      %666 = vmatprep.subr.bf16.mxu0 0
      %667 = vmatpush1.bf16.msra.mxu0 %v623
      %668 = vmatprep.subr.bf16.mxu0 0
      %669 = vmatpush1.bf16.msra.mxu0 %v624
      %670 = vmatprep.subr.bf16.mxu0 0
      %671 = vmatpush1.bf16.msra.mxu0 %v625
      %672 = vmatprep.subr.bf16.mxu0 0
      %673 = vmatpush1.bf16.msra.mxu0 %v626
      %674 = vmatprep.subr.bf16.mxu0 0
      %675 = vmatpush1.bf16.msra.mxu0 %v627
      %676 = vmatprep.mubr.bf16.mxu0 %v494
      %677 = vmatmul.mubr.bf16.gmra.mrb[0].mxu0 %v493
      %v678 = vpop.f32.mrb[0].mxu0
      %v679 = vadd.f32 %v546, %v678
      %v680 = vpop.f32.mrb[0].mxu0
      %v681 = vpop.f32.mrb[0].mxu0
      %v682 = vadd.f32 %v546, %v681
      %v683 = vpop.f32.mrb[0].mxu0
      %684 = vmatprep.mubr.bf16.mxu0 %v496
      %685 = vmatmul.mubr.bf16.gmra.mrb[0].mxu0 %v495
      %v686 = vpop.f32.mrb[0].mxu0
      %v687 = vadd.f32 %v546, %v686
      %v688 = vpop.f32.mrb[0].mxu0
      %v689 = vpop.f32.mrb[0].mxu0
      %v690 = vadd.f32 %v546, %v689
      %v691 = vpop.f32.mrb[0].mxu0
      %692 = vmatprep.mubr.bf16.mxu0 %v498
      %693 = vmatmul.mubr.bf16.gmra.mrb[0].mxu0 %v497
      %v694 = vpop.f32.mrb[0].mxu0
      %v695 = vadd.f32 %v546, %v694
      %v696 = vpop.f32.mrb[0].mxu0
      %v697 = vpop.f32.mrb[0].mxu0
      %v698 = vadd.f32 %v546, %v697
      %v699 = vpop.f32.mrb[0].mxu0
      %700 = vmatprep.mubr.bf16.mxu0 %v500
      %701 = vmatmul.mubr.bf16.gmra.mrb[0].mxu0 %v499
      %v702 = vpop.f32.mrb[0].mxu0
      %v703 = vadd.f32 %v546, %v702
      %v704 = vpop.f32.mrb[0].mxu0
      %v705 = vpop.f32.mrb[0].mxu0
      %v706 = vadd.f32 %v546, %v705
      %v707 = vpop.f32.mrb[0].mxu0
      %708 = vmatprep.mubr.bf16.mxu0 %v502
      %709 = vmatmul.mubr.bf16.gmra.mrb[0].mxu0 %v501
      %v710 = vpop.f32.mrb[0].mxu0
      %v711 = vadd.f32 %v546, %v710
      %v712 = vpop.f32.mrb[0].mxu0
      %v713 = vpop.f32.mrb[0].mxu0
      %v714 = vadd.f32 %v546, %v713
      %v715 = vpop.f32.mrb[0].mxu0
      %716 = vmatprep.mubr.bf16.mxu0 %v504
      %717 = vmatmul.mubr.bf16.gmra.mrb[0].mxu0 %v503
      %v718 = vpop.f32.mrb[0].mxu0
      %v719 = vadd.f32 %v546, %v718
      %v720 = vpop.f32.mrb[0].mxu0
      %v721 = vpop.f32.mrb[0].mxu0
      %v722 = vadd.f32 %v546, %v721
      %v723 = vpop.f32.mrb[0].mxu0
      %724 = vmatprep.mubr.bf16.mxu0 %v506
      %725 = vmatmul.mubr.bf16.gmra.mrb[0].mxu0 %v505
      %v726 = vpop.f32.mrb[0].mxu0
      %v727 = vadd.f32 %v546, %v726
      %v728 = vpop.f32.mrb[0].mxu0
      %v729 = vpop.f32.mrb[0].mxu0
      %v730 = vadd.f32 %v546, %v729
      %v731 = vpop.f32.mrb[0].mxu0
      %732 = vmatprep.mubr.bf16.mxu0 %v508
      %733 = vmatmul.mubr.bf16.gmra.mrb[0].mxu0 %v507
      %v734 = vpop.f32.mrb[0].mxu0
      %v735 = vadd.f32 %v546, %v734
      %v736 = vpop.f32.mrb[0].mxu0
      %v737 = vpop.f32.mrb[0].mxu0
      %v738 = vadd.f32 %v546, %v737
      %v739 = vpop.f32.mrb[0].mxu0
      %740 = vdwg.mxu0
      %v741 = vmax.f32 %v679, 0.0
      %v742 = vmax.f32 %v682, 0.0
      %v743 = vmax.f32 %v687, 0.0
      %v744 = vmax.f32 %v690, 0.0
      %v745 = vmax.f32 %v695, 0.0
      %v746 = vmax.f32 %v698, 0.0
      %v747 = vmax.f32 %v703, 0.0
      %v748 = vmax.f32 %v706, 0.0
      %v749 = vmax.f32 %v711, 0.0
      %v750 = vmax.f32 %v714, 0.0
      %v751 = vmax.f32 %v719, 0.0
      %v752 = vmax.f32 %v722, 0.0
      %v753 = vmax.f32 %v727, 0.0
      %v754 = vmax.f32 %v730, 0.0
      %v755 = vmax.f32 %v735, 0.0
      %v756 = vmax.f32 %v738, 0.0
      %v757 = vpack.c.bf16 %v742, %v741
      %v758 = vpack.c.bf16 %v744, %v743
      %v759 = vpack.c.bf16 %v746, %v745
      %v760 = vpack.c.bf16 %v748, %v747
      %v761 = vpack.c.bf16 %v750, %v749
      %v762 = vpack.c.bf16 %v752, %v751
      %v763 = vpack.c.bf16 %v754, %v753
      %v764 = vpack.c.bf16 %v756, %v755
      %v765 = vld [vmem:[%s4] sm:$0xf]
      %v766 = vld [vmem:[%s4 + $0x4] sm:$0xf]
      %v767 = vld [vmem:[%s4 + $0x8] sm:$0xf]
      %v768 = vld [vmem:[%s4 + $0xc] sm:$0xf]
      %v769 = vld [vmem:[%s4 + $0x10] sm:$0xf]
      %v770 = vld [vmem:[%s4 + $0x14] sm:$0xf]
      %v771 = vld [vmem:[%s4 + $0x18] sm:$0xf]
      %v772 = vld [vmem:[%s4 + $0x1c] sm:$0xf]
      %v773 = vld [vmem:[%s4 + $0x20] sm:$0xf]
      %v774 = vld [vmem:[%s4 + $0x24] sm:$0xf]
      %v775 = vld [vmem:[%s4 + $0x28] sm:$0xf]
      %v776 = vld [vmem:[%s4 + $0x2c] sm:$0xf]
      %v777 = vld [vmem:[%s4 + $0x30] sm:$0xf]
      %v778 = vld [vmem:[%s4 + $0x34] sm:$0xf]
      %v779 = vld [vmem:[%s4 + $0x38] sm:$0xf]
      %v780 = vld [vmem:[%s4 + $0x3c] sm:$0xf]
      %v781 = vld [vmem:[%s5] sm:$0x1]
      %v783 = vlaneseq
      %v784 = vshrl.u32 %v783, 7
      %v785 = vsub.s32 0, %v784
      %v786 = vrot.slane %v781, %v785
      %v804 = vunpack.c.l.b16 %v765
      %v805 = vunpack.c.l.b16 %v766
      %v806 = vunpack.c.l.b16 %v767
      %v807 = vunpack.c.l.b16 %v768
      %v808 = vunpack.c.l.b16 %v769
      %v809 = vunpack.c.l.b16 %v770
      %v810 = vunpack.c.l.b16 %v771
      %v811 = vunpack.c.l.b16 %v772
      %v812 = vunpack.c.l.b16 %v773
      %v813 = vunpack.c.l.b16 %v774
      %v814 = vunpack.c.l.b16 %v775
      %v815 = vunpack.c.l.b16 %v776
      %v816 = vunpack.c.l.b16 %v777
      %v817 = vunpack.c.l.b16 %v778
      %v818 = vunpack.c.l.b16 %v779
      %v819 = vunpack.c.l.b16 %v780
      %v820 = vpack.c.b16 %v805, %v804
      %v821 = vpack.c.b16 %v807, %v806
      %v822 = vpack.c.b16 %v809, %v808
      %v823 = vpack.c.b16 %v811, %v810
      %v824 = vpack.c.b16 %v813, %v812
      %v825 = vpack.c.b16 %v815, %v814
      %v826 = vpack.c.b16 %v817, %v816
      %v827 = vpack.c.b16 %v819, %v818
      %836 = vmatprep.subr.bf16.mxu0 0
      %837 = vmatpush1.bf16.msra.mxu0 %v820
      %838 = vmatprep.subr.bf16.mxu0 0
      %839 = vmatpush1.bf16.msra.mxu0 %v821
      %840 = vmatprep.subr.bf16.mxu0 0
      %841 = vmatpush1.bf16.msra.mxu0 %v822
      %842 = vmatprep.subr.bf16.mxu0 0
      %843 = vmatpush1.bf16.msra.mxu0 %v823
      %844 = vmatprep.subr.bf16.mxu0 0
      %845 = vmatpush1.bf16.msra.mxu0 %v824
      %846 = vmatprep.subr.bf16.mxu0 0
      %847 = vmatpush1.bf16.msra.mxu0 %v825
      %848 = vmatprep.subr.bf16.mxu0 0
      %849 = vmatpush1.bf16.msra.mxu0 %v826
      %850 = vmatprep.subr.bf16.mxu0 0
      %851 = vmatpush1.bf16.msra.mxu0 %v827
      %852 = vmatprep.subr.bf16.mxu0 0
      %853 = vmatpush1.bf16.msra.mxu0 0
      %854 = vmatprep.subr.bf16.mxu0 0
      %855 = vmatpush1.bf16.msra.mxu0 0
      %856 = vmatprep.subr.bf16.mxu0 0
      %857 = vmatpush1.bf16.msra.mxu0 0
      %858 = vmatprep.subr.bf16.mxu0 0
      %859 = vmatpush1.bf16.msra.mxu0 0
      %860 = vmatprep.subr.bf16.mxu0 0
      %861 = vmatpush1.bf16.msra.mxu0 0
      %862 = vmatprep.subr.bf16.mxu0 0
      %863 = vmatpush1.bf16.msra.mxu0 0
      %864 = vmatprep.subr.bf16.mxu0 0
      %865 = vmatpush1.bf16.msra.mxu0 0
      %866 = vmatprep.subr.bf16.mxu0 0
      %867 = vmatpush1.bf16.msra.mxu0 0
      %868 = vmatprep.mubr.bf16.mxu0 0
      %869 = vmatmul.mubr.bf16.gmra.mrb[0].mxu0 %v757
      %v870 = vpop.f32.mrb[0].mxu0
      %v871 = vadd.f32 %v786, %v870
      %v872 = vpop.f32.mrb[0].mxu0
      %v873 = vpop.f32.mrb[0].mxu0
      %v874 = vadd.f32 %v786, %v873
      %v875 = vpop.f32.mrb[0].mxu0
      %876 = vmatprep.mubr.bf16.mxu0 0
      %877 = vmatmul.mubr.bf16.gmra.mrb[0].mxu0 %v758
      %v878 = vpop.f32.mrb[0].mxu0
      %v879 = vadd.f32 %v786, %v878
      %v880 = vpop.f32.mrb[0].mxu0
      %v881 = vpop.f32.mrb[0].mxu0
      %v882 = vadd.f32 %v786, %v881
      %v883 = vpop.f32.mrb[0].mxu0
      %884 = vmatprep.mubr.bf16.mxu0 0
      %885 = vmatmul.mubr.bf16.gmra.mrb[0].mxu0 %v759
      %v886 = vpop.f32.mrb[0].mxu0
      %v887 = vadd.f32 %v786, %v886
      %v888 = vpop.f32.mrb[0].mxu0
      %v889 = vpop.f32.mrb[0].mxu0
      %v890 = vadd.f32 %v786, %v889
      %v891 = vpop.f32.mrb[0].mxu0
      %892 = vmatprep.mubr.bf16.mxu0 0
      %893 = vmatmul.mubr.bf16.gmra.mrb[0].mxu0 %v760
      %v894 = vpop.f32.mrb[0].mxu0
      %v895 = vadd.f32 %v786, %v894
      %v896 = vpop.f32.mrb[0].mxu0
      %v897 = vpop.f32.mrb[0].mxu0
      %v898 = vadd.f32 %v786, %v897
      %v899 = vpop.f32.mrb[0].mxu0
      %900 = vmatprep.mubr.bf16.mxu0 0
      %901 = vmatmul.mubr.bf16.gmra.mrb[0].mxu0 %v761
      %v902 = vpop.f32.mrb[0].mxu0
      %v903 = vadd.f32 %v786, %v902
      %v904 = vpop.f32.mrb[0].mxu0
      %v905 = vpop.f32.mrb[0].mxu0
      %v906 = vadd.f32 %v786, %v905
      %v907 = vpop.f32.mrb[0].mxu0
      %908 = vmatprep.mubr.bf16.mxu0 0
      %909 = vmatmul.mubr.bf16.gmra.mrb[0].mxu0 %v762
      %v910 = vpop.f32.mrb[0].mxu0
      %v911 = vadd.f32 %v786, %v910
      %v912 = vpop.f32.mrb[0].mxu0
      %v913 = vpop.f32.mrb[0].mxu0
      %v914 = vadd.f32 %v786, %v913
      %v915 = vpop.f32.mrb[0].mxu0
      %916 = vmatprep.mubr.bf16.mxu0 0
      %917 = vmatmul.mubr.bf16.gmra.mrb[0].mxu0 %v763
      %v918 = vpop.f32.mrb[0].mxu0
      %v919 = vadd.f32 %v786, %v918
      %v920 = vpop.f32.mrb[0].mxu0
      %v921 = vpop.f32.mrb[0].mxu0
      %v922 = vadd.f32 %v786, %v921
      %v923 = vpop.f32.mrb[0].mxu0
      %924 = vmatprep.mubr.bf16.mxu0 0
      %925 = vmatmul.mubr.bf16.gmra.mrb[0].mxu0 %v764
      %v926 = vpop.f32.mrb[0].mxu0
      %v927 = vadd.f32 %v786, %v926
      %v928 = vpop.f32.mrb[0].mxu0
      %v929 = vpop.f32.mrb[0].mxu0
      %v930 = vadd.f32 %v786, %v929
      %v931 = vpop.f32.mrb[0].mxu0
      %932 = vdwg.mxu0
      %v933 = vmax.f32 %v871, 0.0
      %v934 = vmax.f32 %v874, 0.0
      %v935 = vmax.f32 %v879, 0.0
      %v936 = vmax.f32 %v882, 0.0
      %v937 = vmax.f32 %v887, 0.0
      %v938 = vmax.f32 %v890, 0.0
      %v939 = vmax.f32 %v895, 0.0
      %v940 = vmax.f32 %v898, 0.0
      %v941 = vmax.f32 %v903, 0.0
      %v942 = vmax.f32 %v906, 0.0
      %v943 = vmax.f32 %v911, 0.0
      %v944 = vmax.f32 %v914, 0.0
      %v945 = vmax.f32 %v919, 0.0
      %v946 = vmax.f32 %v922, 0.0
      %v947 = vmax.f32 %v927, 0.0
      %v948 = vmax.f32 %v930, 0.0
      %v949 = vpack.c.bf16 %v934, %v933
      %v950 = vpack.c.bf16 %v936, %v935
      %v951 = vpack.c.bf16 %v938, %v937
      %v952 = vpack.c.bf16 %v940, %v939
      %v953 = vpack.c.bf16 %v942, %v941
      %v954 = vpack.c.bf16 %v944, %v943
      %v955 = vpack.c.bf16 %v946, %v945
      %v956 = vpack.c.bf16 %v948, %v947
      %v957 = vld [vmem:[%s6] sm:$0xf]
      %v958 = vld [vmem:[%s6 + $0x4] sm:$0xf]
      %v959 = vld [vmem:[%s6 + $0x8] sm:$0xf]
      %v960 = vld [vmem:[%s6 + $0xc] sm:$0xf]
      %v961 = vld [vmem:[%s6 + $0x10] sm:$0xf]
      %v962 = vld [vmem:[%s6 + $0x14] sm:$0xf]
      %v963 = vld [vmem:[%s6 + $0x18] sm:$0xf]
      %v964 = vld [vmem:[%s6 + $0x1c] sm:$0xf]
      %v965 = vld [vmem:[%s6 + $0x20] sm:$0xf]
      %v966 = vld [vmem:[%s6 + $0x24] sm:$0xf]
      %v967 = vld [vmem:[%s6 + $0x28] sm:$0xf]
      %v968 = vld [vmem:[%s6 + $0x2c] sm:$0xf]
      %v969 = vld [vmem:[%s6 + $0x30] sm:$0xf]
      %v970 = vld [vmem:[%s6 + $0x34] sm:$0xf]
      %v971 = vld [vmem:[%s6 + $0x38] sm:$0xf]
      %v972 = vld [vmem:[%s6 + $0x3c] sm:$0xf]
      %v973 = vld [vmem:[%s7] sm:$0x1]
      %v975 = vlaneseq
      %v976 = vshrl.u32 %v975, 7
      %v977 = vsub.s32 0, %v976
      %v978 = vrot.slane %v973, %v977
      %v996 = vunpack.c.l.b16 %v957
      %v997 = vunpack.c.l.b16 %v958
      %v998 = vunpack.c.l.b16 %v959
      %v999 = vunpack.c.l.b16 %v960
      %v1000 = vunpack.c.l.b16 %v961
      %v1001 = vunpack.c.l.b16 %v962
      %v1002 = vunpack.c.l.b16 %v963
      %v1003 = vunpack.c.l.b16 %v964
      %v1004 = vunpack.c.l.b16 %v965
      %v1005 = vunpack.c.l.b16 %v966
      %v1006 = vunpack.c.l.b16 %v967
      %v1007 = vunpack.c.l.b16 %v968
      %v1008 = vunpack.c.l.b16 %v969
      %v1009 = vunpack.c.l.b16 %v970
      %v1010 = vunpack.c.l.b16 %v971
      %v1011 = vunpack.c.l.b16 %v972
      %v1012 = vpack.c.b16 %v997, %v996
      %v1013 = vpack.c.b16 %v999, %v998
      %v1014 = vpack.c.b16 %v1001, %v1000
      %v1015 = vpack.c.b16 %v1003, %v1002
      %v1016 = vpack.c.b16 %v1005, %v1004
      %v1017 = vpack.c.b16 %v1007, %v1006
      %v1018 = vpack.c.b16 %v1009, %v1008
      %v1019 = vpack.c.b16 %v1011, %v1010
      %1028 = vmatprep.subr.bf16.mxu0 0
      %1029 = vmatpush1.bf16.msra.mxu0 %v1012
      %1030 = vmatprep.subr.bf16.mxu0 0
      %1031 = vmatpush1.bf16.msra.mxu0 %v1013
      %1032 = vmatprep.subr.bf16.mxu0 0
      %1033 = vmatpush1.bf16.msra.mxu0 %v1014
      %1034 = vmatprep.subr.bf16.mxu0 0
      %1035 = vmatpush1.bf16.msra.mxu0 %v1015
      %1036 = vmatprep.subr.bf16.mxu0 0
      %1037 = vmatpush1.bf16.msra.mxu0 %v1016
      %1038 = vmatprep.subr.bf16.mxu0 0
      %1039 = vmatpush1.bf16.msra.mxu0 %v1017
      %1040 = vmatprep.subr.bf16.mxu0 0
      %1041 = vmatpush1.bf16.msra.mxu0 %v1018
      %1042 = vmatprep.subr.bf16.mxu0 0
      %1043 = vmatpush1.bf16.msra.mxu0 %v1019
      %1044 = vmatprep.subr.bf16.mxu0 0
      %1045 = vmatpush1.bf16.msra.mxu0 0
      %1046 = vmatprep.subr.bf16.mxu0 0
      %1047 = vmatpush1.bf16.msra.mxu0 0
      %1048 = vmatprep.subr.bf16.mxu0 0
      %1049 = vmatpush1.bf16.msra.mxu0 0
      %1050 = vmatprep.subr.bf16.mxu0 0
      %1051 = vmatpush1.bf16.msra.mxu0 0
      %1052 = vmatprep.subr.bf16.mxu0 0
      %1053 = vmatpush1.bf16.msra.mxu0 0
      %1054 = vmatprep.subr.bf16.mxu0 0
      %1055 = vmatpush1.bf16.msra.mxu0 0
      %1056 = vmatprep.subr.bf16.mxu0 0
      %1057 = vmatpush1.bf16.msra.mxu0 0
      %1058 = vmatprep.subr.bf16.mxu0 0
      %1059 = vmatpush1.bf16.msra.mxu0 0
      %1060 = vmatprep.mubr.bf16.mxu0 0
      %1061 = vmatmul.mubr.bf16.gmra.mrb[0].mxu0 %v949
      %v1062 = vpop.f32.mrb[0].mxu0
      %v1063 = vadd.f32 %v978, %v1062
      %v1064 = vpop.f32.mrb[0].mxu0
      %v1065 = vpop.f32.mrb[0].mxu0
      %v1066 = vadd.f32 %v978, %v1065
      %v1067 = vpop.f32.mrb[0].mxu0
      %1068 = vmatprep.mubr.bf16.mxu0 0
      %1069 = vmatmul.mubr.bf16.gmra.mrb[0].mxu0 %v950
      %v1070 = vpop.f32.mrb[0].mxu0
      %v1071 = vadd.f32 %v978, %v1070
      %v1072 = vpop.f32.mrb[0].mxu0
      %v1073 = vpop.f32.mrb[0].mxu0
      %v1074 = vadd.f32 %v978, %v1073
      %v1075 = vpop.f32.mrb[0].mxu0
      %1076 = vmatprep.mubr.bf16.mxu0 0
      %1077 = vmatmul.mubr.bf16.gmra.mrb[0].mxu0 %v951
      %v1078 = vpop.f32.mrb[0].mxu0
      %v1079 = vadd.f32 %v978, %v1078
      %v1080 = vpop.f32.mrb[0].mxu0
      %v1081 = vpop.f32.mrb[0].mxu0
      %v1082 = vadd.f32 %v978, %v1081
      %v1083 = vpop.f32.mrb[0].mxu0
      %1084 = vmatprep.mubr.bf16.mxu0 0
      %1085 = vmatmul.mubr.bf16.gmra.mrb[0].mxu0 %v952
      %v1086 = vpop.f32.mrb[0].mxu0
      %v1087 = vadd.f32 %v978, %v1086
      %v1088 = vpop.f32.mrb[0].mxu0
      %v1089 = vpop.f32.mrb[0].mxu0
      %v1090 = vadd.f32 %v978, %v1089
      %v1091 = vpop.f32.mrb[0].mxu0
      %1092 = vmatprep.mubr.bf16.mxu0 0
      %1093 = vmatmul.mubr.bf16.gmra.mrb[0].mxu0 %v953
      %v1094 = vpop.f32.mrb[0].mxu0
      %v1095 = vadd.f32 %v978, %v1094
      %v1096 = vpop.f32.mrb[0].mxu0
      %v1097 = vpop.f32.mrb[0].mxu0
      %v1098 = vadd.f32 %v978, %v1097
      %v1099 = vpop.f32.mrb[0].mxu0
      %1100 = vmatprep.mubr.bf16.mxu0 0
      %1101 = vmatmul.mubr.bf16.gmra.mrb[0].mxu0 %v954
      %v1102 = vpop.f32.mrb[0].mxu0
      %v1103 = vadd.f32 %v978, %v1102
      %v1104 = vpop.f32.mrb[0].mxu0
      %v1105 = vpop.f32.mrb[0].mxu0
      %v1106 = vadd.f32 %v978, %v1105
      %v1107 = vpop.f32.mrb[0].mxu0
      %1108 = vmatprep.mubr.bf16.mxu0 0
      %1109 = vmatmul.mubr.bf16.gmra.mrb[0].mxu0 %v955
      %v1110 = vpop.f32.mrb[0].mxu0
      %v1111 = vadd.f32 %v978, %v1110
      %v1112 = vpop.f32.mrb[0].mxu0
      %v1113 = vpop.f32.mrb[0].mxu0
      %v1114 = vadd.f32 %v978, %v1113
      %v1115 = vpop.f32.mrb[0].mxu0
      %1116 = vmatprep.mubr.bf16.mxu0 0
      %1117 = vmatmul.mubr.bf16.gmra.mrb[0].mxu0 %v956
      %v1118 = vpop.f32.mrb[0].mxu0
      %v1119 = vadd.f32 %v978, %v1118
      %v1120 = vpop.f32.mrb[0].mxu0
      %v1121 = vpop.f32.mrb[0].mxu0
      %v1122 = vadd.f32 %v978, %v1121
      %v1123 = vpop.f32.mrb[0].mxu0
      %1124 = vdwg.mxu0
      %v1125 = vmax.f32 %v1063, 0.0
      %v1126 = vmax.f32 %v1066, 0.0
      %v1127 = vmax.f32 %v1071, 0.0
      %v1128 = vmax.f32 %v1074, 0.0
      %v1129 = vmax.f32 %v1079, 0.0
      %v1130 = vmax.f32 %v1082, 0.0
      %v1131 = vmax.f32 %v1087, 0.0
      %v1132 = vmax.f32 %v1090, 0.0
      %v1133 = vmax.f32 %v1095, 0.0
      %v1134 = vmax.f32 %v1098, 0.0
      %v1135 = vmax.f32 %v1103, 0.0
      %v1136 = vmax.f32 %v1106, 0.0
      %v1137 = vmax.f32 %v1111, 0.0
      %v1138 = vmax.f32 %v1114, 0.0
      %v1139 = vmax.f32 %v1119, 0.0
      %v1140 = vmax.f32 %v1122, 0.0
      %v1141 = vpack.c.bf16 %v1126, %v1125
      %v1142 = vpack.c.bf16 %v1128, %v1127
      %v1143 = vpack.c.bf16 %v1130, %v1129
      %v1144 = vpack.c.bf16 %v1132, %v1131
      %v1145 = vpack.c.bf16 %v1134, %v1133
      %v1146 = vpack.c.bf16 %v1136, %v1135
      %v1147 = vpack.c.bf16 %v1138, %v1137
      %v1148 = vpack.c.bf16 %v1140, %v1139
      %v1149 = vld [vmem:[%s8] sm:$0xf]
      %v1150 = vld [vmem:[%s8 + $0x4] sm:$0xf]
      %v1151 = vld [vmem:[%s8 + $0x8] sm:$0xf]
      %v1152 = vld [vmem:[%s8 + $0xc] sm:$0xf]
      %v1153 = vld [vmem:[%s8 + $0x10] sm:$0xf]
      %v1154 = vld [vmem:[%s8 + $0x14] sm:$0xf]
      %v1155 = vld [vmem:[%s8 + $0x18] sm:$0xf]
      %v1156 = vld [vmem:[%s8 + $0x1c] sm:$0xf]
      %v1157 = vld [vmem:[%s8 + $0x20] sm:$0xf]
      %v1158 = vld [vmem:[%s8 + $0x24] sm:$0xf]
      %v1159 = vld [vmem:[%s8 + $0x28] sm:$0xf]
      %v1160 = vld [vmem:[%s8 + $0x2c] sm:$0xf]
      %v1161 = vld [vmem:[%s8 + $0x30] sm:$0xf]
      %v1162 = vld [vmem:[%s8 + $0x34] sm:$0xf]
      %v1163 = vld [vmem:[%s8 + $0x38] sm:$0xf]
      %v1164 = vld [vmem:[%s8 + $0x3c] sm:$0xf]
      %v1181 = vunpack.c.l.b16 %v1149
      %v1182 = vunpack.c.l.b16 %v1150
      %v1183 = vunpack.c.l.b16 %v1151
      %v1184 = vunpack.c.l.b16 %v1152
      %v1185 = vunpack.c.l.b16 %v1153
      %v1186 = vunpack.c.l.b16 %v1154
      %v1187 = vunpack.c.l.b16 %v1155
      %v1188 = vunpack.c.l.b16 %v1156
      %v1189 = vunpack.c.l.b16 %v1157
      %v1190 = vunpack.c.l.b16 %v1158
      %v1191 = vunpack.c.l.b16 %v1159
      %v1192 = vunpack.c.l.b16 %v1160
      %v1193 = vunpack.c.l.b16 %v1161
      %v1194 = vunpack.c.l.b16 %v1162
      %v1195 = vunpack.c.l.b16 %v1163
      %v1196 = vunpack.c.l.b16 %v1164
      %v1197 = vpack.c.b16 %v1182, %v1181
      %v1198 = vpack.c.b16 %v1184, %v1183
      %v1199 = vpack.c.b16 %v1186, %v1185
      %v1200 = vpack.c.b16 %v1188, %v1187
      %v1201 = vpack.c.b16 %v1190, %v1189
      %v1202 = vpack.c.b16 %v1192, %v1191
      %v1203 = vpack.c.b16 %v1194, %v1193
      %v1204 = vpack.c.b16 %v1196, %v1195
      %1213 = vmatprep.subr.bf16.mxu0 0
      %1214 = vmatpush1.bf16.msra.mxu0 %v1197
      %1215 = vmatprep.subr.bf16.mxu0 0
      %1216 = vmatpush1.bf16.msra.mxu0 %v1198
      %1217 = vmatprep.subr.bf16.mxu0 0
      %1218 = vmatpush1.bf16.msra.mxu0 %v1199
      %1219 = vmatprep.subr.bf16.mxu0 0
      %1220 = vmatpush1.bf16.msra.mxu0 %v1200
      %1221 = vmatprep.subr.bf16.mxu0 0
      %1222 = vmatpush1.bf16.msra.mxu0 %v1201
      %1223 = vmatprep.subr.bf16.mxu0 0
      %1224 = vmatpush1.bf16.msra.mxu0 %v1202
      %1225 = vmatprep.subr.bf16.mxu0 0
      %1226 = vmatpush1.bf16.msra.mxu0 %v1203
      %1227 = vmatprep.subr.bf16.mxu0 0
      %1228 = vmatpush1.bf16.msra.mxu0 %v1204
      %1229 = vmatprep.subr.bf16.mxu0 0
      %1230 = vmatpush1.bf16.msra.mxu0 0
      %1231 = vmatprep.subr.bf16.mxu0 0
      %1232 = vmatpush1.bf16.msra.mxu0 0
      %1233 = vmatprep.subr.bf16.mxu0 0
      %1234 = vmatpush1.bf16.msra.mxu0 0
      %1235 = vmatprep.subr.bf16.mxu0 0
      %1236 = vmatpush1.bf16.msra.mxu0 0
      %1237 = vmatprep.subr.bf16.mxu0 0
      %1238 = vmatpush1.bf16.msra.mxu0 0
      %1239 = vmatprep.subr.bf16.mxu0 0
      %1240 = vmatpush1.bf16.msra.mxu0 0
      %1241 = vmatprep.subr.bf16.mxu0 0
      %1242 = vmatpush1.bf16.msra.mxu0 0
      %1243 = vmatprep.subr.bf16.mxu0 0
      %1244 = vmatpush1.bf16.msra.mxu0 0
      %1245 = vmatprep.mubr.bf16.mxu0 0
      %1246 = vmatmul.mubr.bf16.gmra.mrb[0].mxu0 %v1141
      %v1247 = vpop.f32.mrb[0].mxu0
      %v1248 = vadd.f32 0.0, %v1247
      %v1249 = vpop.f32.mrb[0].mxu0
      %v1250 = vpop.f32.mrb[0].mxu0
      %v1251 = vadd.f32 0.0, %v1250
      %v1252 = vpop.f32.mrb[0].mxu0
      %1253 = vmatprep.mubr.bf16.mxu0 0
      %1254 = vmatmul.mubr.bf16.gmra.mrb[0].mxu0 %v1142
      %v1255 = vpop.f32.mrb[0].mxu0
      %v1256 = vadd.f32 0.0, %v1255
      %v1257 = vpop.f32.mrb[0].mxu0
      %v1258 = vpop.f32.mrb[0].mxu0
      %v1259 = vadd.f32 0.0, %v1258
      %v1260 = vpop.f32.mrb[0].mxu0
      %1261 = vmatprep.mubr.bf16.mxu0 0
      %1262 = vmatmul.mubr.bf16.gmra.mrb[0].mxu0 %v1143
      %v1263 = vpop.f32.mrb[0].mxu0
      %v1264 = vadd.f32 0.0, %v1263
      %v1265 = vpop.f32.mrb[0].mxu0
      %v1266 = vpop.f32.mrb[0].mxu0
      %v1267 = vadd.f32 0.0, %v1266
      %v1268 = vpop.f32.mrb[0].mxu0
      %1269 = vmatprep.mubr.bf16.mxu0 0
      %1270 = vmatmul.mubr.bf16.gmra.mrb[0].mxu0 %v1144
      %v1271 = vpop.f32.mrb[0].mxu0
      %v1272 = vadd.f32 0.0, %v1271
      %v1273 = vpop.f32.mrb[0].mxu0
      %v1274 = vpop.f32.mrb[0].mxu0
      %v1275 = vadd.f32 0.0, %v1274
      %v1276 = vpop.f32.mrb[0].mxu0
      %1277 = vmatprep.mubr.bf16.mxu0 0
      %1278 = vmatmul.mubr.bf16.gmra.mrb[0].mxu0 %v1145
      %v1279 = vpop.f32.mrb[0].mxu0
      %v1280 = vadd.f32 0.0, %v1279
      %v1281 = vpop.f32.mrb[0].mxu0
      %v1282 = vpop.f32.mrb[0].mxu0
      %v1283 = vadd.f32 0.0, %v1282
      %v1284 = vpop.f32.mrb[0].mxu0
      %1285 = vmatprep.mubr.bf16.mxu0 0
      %1286 = vmatmul.mubr.bf16.gmra.mrb[0].mxu0 %v1146
      %v1287 = vpop.f32.mrb[0].mxu0
      %v1288 = vadd.f32 0.0, %v1287
      %v1289 = vpop.f32.mrb[0].mxu0
      %v1290 = vpop.f32.mrb[0].mxu0
      %v1291 = vadd.f32 0.0, %v1290
      %v1292 = vpop.f32.mrb[0].mxu0
      %1293 = vmatprep.mubr.bf16.mxu0 0
      %1294 = vmatmul.mubr.bf16.gmra.mrb[0].mxu0 %v1147
      %v1295 = vpop.f32.mrb[0].mxu0
      %v1296 = vadd.f32 0.0, %v1295
      %v1297 = vpop.f32.mrb[0].mxu0
      %v1298 = vpop.f32.mrb[0].mxu0
      %v1299 = vadd.f32 0.0, %v1298
      %v1300 = vpop.f32.mrb[0].mxu0
      %1301 = vmatprep.mubr.bf16.mxu0 0
      %1302 = vmatmul.mubr.bf16.gmra.mrb[0].mxu0 %v1148
      %v1303 = vpop.f32.mrb[0].mxu0
      %v1304 = vadd.f32 0.0, %v1303
      %v1305 = vpop.f32.mrb[0].mxu0
      %v1306 = vpop.f32.mrb[0].mxu0
      %v1307 = vadd.f32 0.0, %v1306
      %v1308 = vpop.f32.mrb[0].mxu0
      %1309 = vdwg.mxu0
      %1310 = vst [vmem:[%s362] sm:$0xff] %v1248
      %1311 = vst [vmem:[%s362 + $0x8] sm:$0xff] %v1251
      %1312 = vst [vmem:[%s362 + $0x10] sm:$0xff] %v1256
      %1313 = vst [vmem:[%s362 + $0x18] sm:$0xff] %v1259
      %1314 = vst [vmem:[%s362 + $0x20] sm:$0xff] %v1264
      %1315 = vst [vmem:[%s362 + $0x28] sm:$0xff] %v1267
      %1316 = vst [vmem:[%s362 + $0x30] sm:$0xff] %v1272
      %1317 = vst [vmem:[%s362 + $0x38] sm:$0xff] %v1275
      %1318 = vst [vmem:[%s362 + $0x40] sm:$0xff] %v1280
      %1319 = vst [vmem:[%s362 + $0x48] sm:$0xff] %v1283
      %1320 = vst [vmem:[%s362 + $0x50] sm:$0xff] %v1288
      %1321 = vst [vmem:[%s362 + $0x58] sm:$0xff] %v1291
      %1322 = vst [vmem:[%s362 + $0x60] sm:$0xff] %v1296
      %1323 = vst [vmem:[%s362 + $0x68] sm:$0xff] %v1299
      %1324 = vst [vmem:[%s362 + $0x70] sm:$0xff] %v1304
      %1325 = vst [vmem:[%s362 + $0x78] sm:$0xff] %v1307
      %s1326 = smul.u32 16, %s20
      %p1327 = scmp.lt.s32.totalorder %s1326, 31
      %s1328 = scalar_select %p1327, %s1326, 31
      %s1329 = smul.addr %s1328, 8
      %s1330 = scalar_lea.vmem %s9, %s1329
      // Predicated region
      $region57: #{mlp_metric_forward.1} parent=55 // pred_check
        %p1331 = pneg %p237
      $region58: #{mlp_metric_forward.1} parent=55 // pred_check_branch
        %1333 = sbr.rel (%p1331) target = $region60
      $region59: #{mlp_metric_forward.1} parent=55 // pred_region
        %s1334 = smul.u32 16, %s20
      $region60: #{mlp_metric_forward.1} parent=55 // pred_fallthru
        _
    $region56: #{mlp_metric_forward.1} parent=5 // pred_fallthru
      _
    %p1335 = scmp.le.s32.totalorder 2, %s15
    // Predicated region
    $region61: #{mlp_metric_forward.1} parent=5 // pred_check
      %p1336 = pneg %p1335
    $region62: #{mlp_metric_forward.1} parent=5 // pred_check_branch
      %1338 = sbr.rel (%p1336) target = $region64
    $region63: #{mlp_metric_forward.1} parent=5 // pred_region
      %s1339 = ssub.s32 %s15, 2
      // Predicated region
      $region65: #{mlp_metric_forward.1} parent=63 // pred_check
        %p1340 = pneg %p243
      $region66: #{mlp_metric_forward.1} parent=63 // pred_check_branch
        %1342 = sbr.rel (%p1340) target = $region68
      $region67: #{mlp_metric_forward.1} parent=63 // pred_region
        %s1343 = smul.u32 16, %s21
        %p1344 = scmp.lt.s32.totalorder %s1343, 31
        %s1345 = scalar_select %p1344, %s1343, 31
        %s1346 = smul.addr %s1345, 8
        %s1347 = scalar_lea.vmem %s9, %s1346
      $region68: #{mlp_metric_forward.1} parent=63 // pred_fallthru
        _
    $region64: #{mlp_metric_forward.1} parent=5 // pred_fallthru
      _
  $region6: #{mlp_metric_forward.1} parent=0 // loop_footer
    %s19 = sadd.s32 1, %s15
  $region7: #{mlp_metric_forward.1} parent=0 // loop_footer_branch
    %14 = sbr.rel target = $region3
  $region8: #{mlp_metric_forward.1} parent=0 // loop_exit
    _

</llo_original>
